<compile_context>
chip_gen: v7x
topology: tpu7x:2x2x1
jax: 0.10.0
libtpu: 0.0.40
codegen_flags: <defaults>
</compile_context>

<pallas_src>
import functools

import numpy as np
import jax
import jax.numpy as jnp
from jax.experimental import pallas as pl
from jax.experimental.pallas import tpu as pltpu


# ----------------------------------------------------------------------------
# Deterministic mel filterbank construction (replaces paderbox.get_fbanks).
# ----------------------------------------------------------------------------
def _hz2mel(f):
    return 2595.0 * np.log10(1.0 + np.asarray(f, dtype=np.float64) / 700.0)


def _mel2hz(m):
    return 700.0 * (10.0 ** (np.asarray(m, dtype=np.float64) / 2595.0) - 1.0)


def get_fbanks(sample_rate, stft_size, number_of_filters,
               lowest_frequency=50.0, highest_frequency=None):
    """Triangular mel filterbank, shape (M, F)."""
    if highest_frequency is None:
        highest_frequency = sample_rate / 2
    n_freqs = stft_size // 2 + 1
    mel_pts = np.linspace(_hz2mel(lowest_frequency), _hz2mel(highest_frequency),
                          number_of_filters + 2)
    hz_pts = _mel2hz(mel_pts)
    bins = hz_pts / sample_rate * stft_size
    freqs = np.arange(n_freqs, dtype=np.float64)
    fbanks = np.zeros((number_of_filters, n_freqs), dtype=np.float64)
    for m in range(number_of_filters):
        left, center, right = bins[m], bins[m + 1], bins[m + 2]
        rising = (freqs - left) / max(center - left, 1e-9)
        falling = (right - freqs) / max(right - center, 1e-9)
        fbanks[m] = np.maximum(0.0, np.minimum(rising, falling))
    return fbanks.astype(np.float32)


def make_mel_weights(sample_rate, stft_size, number_of_filters,
                     lowest_frequency=50.0, highest_frequency=None):
    fb = get_fbanks(sample_rate, stft_size, number_of_filters,
                    lowest_frequency, highest_frequency)
    fb = fb / (fb.sum(axis=-1, keepdims=True) + 1e-6)   # as in MelTransform.__init__
    return jnp.asarray(fb.T)                             # (F, M) == self.fbanks


# ----------------------------------------------------------------------------
# Pallas kernels
# ----------------------------------------------------------------------------
def _lshift(z, k):
    """y[:, l] = z[:, l + k] (wrap-around values are masked by the caller)."""
    return jnp.concatenate([z[:, k:], z[:, :k]], axis=1)


def _rshift(z, k):
    """y[:, l] = z[:, l - k] (wrap-around values are masked by the caller)."""
    return jnp.concatenate([z[:, -k:], z[:, :-k]], axis=1)


def _delta5(z, t, T):
    """torchaudio compute_deltas (win_length=5, replicate padding).

    z: (M, G*T) features, items concatenated along the lane (time) axis.
    t: (1, G*T) int32, within-item frame index (broadcast over mel rows).
    Edge replication per item is expressed purely with in-item values, so the
    lane shifts may wrap across item boundaries without affecting the result.
    """
    zp1, zp2 = _lshift(z, 1), _lshift(z, 2)
    zm1, zm2 = _rshift(z, 1), _rshift(z, 2)
    c_p1 = jnp.where(t == T - 1, z, zp1)
    c_p2 = jnp.where(t == T - 1, z, jnp.where(t >= T - 2, zp1, zp2))
    c_m1 = jnp.where(t == 0, z, zm1)
    c_m2 = jnp.where(t == 0, z, jnp.where(t <= 1, zm1, zm2))
    # d_t = (1*(c_{t+1}-c_{t-1}) + 2*(c_{t+2}-c_{t-2})) / 10
    return (c_p1 - c_m1 + 2.0 * (c_p2 - c_m2)) * 0.1


def _melspec_kernel(x_ref, fbT_ref, tmod_ref, xc_ref, stat_ref, *,
                    mel_eps, add_deltas, add_delta_deltas):
    """power -> mel -> log -> deltas for G items, time on the lane axis.

    x_ref:    (G, T, 2F')   interleaved re/im STFT block (guard-band bins dropped)
    fbT_ref:  (M, 2F')      transposed row-duplicated mel filterbank
    tmod_ref: (1, G*T)      within-item frame index (int32)
    xc_ref:   (G, K, M, T)  log-mel [, delta][, delta-delta]
    stat_ref: (G, K, M, 2)  per-item [sum, sum-of-squares] over time
    """
    G, T, F2 = x_ref.shape
    xb = x_ref[...]                                    # (G, T, 2F')
    xsq = (xb * xb).reshape(G * T, F2)                 # (G*T, 2F')

    # One batched mel matmul for the whole group:
    #   melT[m, g*T+t] = sum_f fb_dup[f, m] * |X[g, t, f]|^2  ==  (power @ fbanks)^T
    melT = jax.lax.dot_general(
        fbT_ref[...], xsq, (((1,), (1,)), ((), ())),
        preferred_element_type=jnp.float32)            # (M, G*T)
    lm = jnp.log(melT + mel_eps)

    feats = [lm]
    if add_deltas or add_delta_deltas:
        t = tmod_ref[...]                              # (1, G*T) int32
        d = _delta5(lm, t, T)
        if add_deltas:
            feats.append(d)
        if add_delta_deltas:
            feats.append(_delta5(d, t, T))

    # Per-item stores + per-item normalization statistics.  Only slices /
    # reductions / stores remain in this small static loop (no matmuls, no
    # large temporaries).
    for g in range(G):
        lo = g * T
        for k, f in enumerate(feats):
            fg = f[:, lo:lo + T]                       # (M, T) static lane slice
            xc_ref[g, k] = fg
            s = jnp.sum(fg, axis=-1, keepdims=True)
            q = jnp.sum(fg * fg, axis=-1, keepdims=True)
            stat_ref[g, k] = jnp.concatenate([s, q], axis=-1)   # (M, 2)


def _norm_kernel(x_ref, mean_ref, inv_ref, o_ref, *, clamp):
    """InputNormalization (shift+scale over 'bt') + clamp, one batch item/step.

    x_ref:    (C, K, M, T)
    mean_ref: (C, K, M, 1)
    inv_ref:  (C, K, M, 1)
    o_ref:    (K, C, M, T)   final layout (reshapes freely to (K*C, M, T))
    """
    C, K = x_ref.shape[0], x_ref.shape[1]
    for c in range(C):
        for k in range(K):
            y = (x_ref[c, k] - mean_ref[c, k]) * inv_ref[c, k]   # (M, T)
            if clamp is not None:
                y = jnp.clip(y, -clamp, clamp)
            o_ref[k, c] = y


# ----------------------------------------------------------------------------
# Wrapper
# ----------------------------------------------------------------------------
def normalized_logmel_extractor(x, fbanks, seq_len=None, *,
                                add_deltas=True, add_delta_deltas=True,
                                mel_eps=1e-12, norm_eps=1e-5, clamp=6.0,
                                group_size=8):
    """x: (B, C, T, F, 2) float32.  fbanks: (F, M).  Returns ((B, K*C, M, T), seq_len)."""
    B, C, T, F, two = x.shape
    assert two == 2
    Fb, M = fbanks.shape
    assert Fb == F
    N = B * C
    K = 1 + bool(add_deltas) + bool(add_delta_deltas)

    # --- Drop trailing all-zero filterbank bins (Nyquist guard band) ----------
    # Done purely via the x BlockSpec window (no XLA slice/copy of x).  Exact by
    # construction: only rows that are verified all-zero may be dropped, and we
    # never drop below a lane-tile-friendly width (2*F_keep multiple of 128).
    F_keep = F
    try:
        fb_np = np.asarray(jax.device_get(fbanks))
        n_trail = 0
        while n_trail < F - 1 and not np.any(fb_np[F - 1 - n_trail]):
            n_trail += 1
        cand = ((F - n_trail) + 63) // 64 * 64
        if 0 < cand < F:
            F_keep = cand
    except Exception:
        F_keep = F       # fbanks not concrete (e.g. traced); keep all bins
    F2 = 2 * F_keep

    fbanks_f32 = fbanks.astype(jnp.float32)
    # Row-duplicated filterbank: (x^2 interleaved re/im) @ fb_dup == power @ fbanks.
    fbT = jnp.repeat(fbanks_f32[:F_keep], 2, axis=0).T            # (M, 2*F_keep)

    # --- Group size: VMEM-budgeted, >=2 grid steps when possible (v7x 2 TCs) --
    def _k1_bytes(g):
        xb = g * T * F2                   # x block
        ob = g * K * M * T                # xc block
        sb = g * K * M * 2                # stats block
        fb = M * F2                       # filterbank
        work = xb + (K + 2) * M * g * T   # xsq + feature temporaries (estimate)
        return 4 * (2 * (xb + ob + sb) + 2 * fb + work)

    G = max(1, min(group_size, pl.cdiv(N, 2) if N > 1 else 1))
    while G > 1 and _k1_bytes(G) > 40 * 2**20:   # conservative: fits v7x's 64 MiB
        G -= 1
    n_blocks = pl.cdiv(N, G)
    N_pad = n_blocks * G

    # (B, C, T, F, 2) -> (N, T, 2F): free reshape, re/im axis is innermost.
    x2f = x.astype(jnp.float32).reshape(N, T, 2 * F)
    if N_pad != N:
        # Pad the trailing partial group with zeros; padded outputs are ignored.
        x2f = jnp.pad(x2f, ((0, N_pad - N), (0, 0), (0, 0)))

    # Within-item frame index for the delta edge masks (avoids in-kernel int div).
    tmod = jnp.asarray(np.tile(np.arange(T, dtype=np.int32), G))[None]   # (1, G*T)

    # --- Kernel 1: power -> mel -> log -> deltas + per-item stats -------------
    kernel1 = functools.partial(
        _melspec_kernel, mel_eps=mel_eps,
        add_deltas=add_deltas, add_delta_deltas=add_delta_deltas)
    vmem1 = int(min(64 * 2**20, max(32 * 2**20, 2 * _k1_bytes(G))))
    xc, stats = pl.pallas_call(
        kernel1,
        grid=(n_blocks,),
        in_specs=[pl.BlockSpec((G, T, F2), lambda i: (i, 0, 0)),
                  pl.BlockSpec((M, F2), lambda i: (0, 0)),
                  pl.BlockSpec((1, G * T), lambda i: (0, 0))],
        out_specs=(pl.BlockSpec((G, K, M, T), lambda i: (i, 0, 0, 0)),
                   pl.BlockSpec((G, K, M, 2), lambda i: (i, 0, 0, 0))),
        out_shape=(jax.ShapeDtypeStruct((N_pad, K, M, T), jnp.float32),
                   jax.ShapeDtypeStruct((N_pad, K, M, 2), jnp.float32)),
        compiler_params=pltpu.CompilerParams(
            dimension_semantics=("parallel",),
            vmem_limit_bytes=vmem1),
    )(x2f, fbT, tmod)

    # --- Tiny (C, K, M) statistics in plain XLA (no HBM re-read of xc) --------
    count = float(B * T)
    st = stats[:N].reshape(B, C, K, M, 2).sum(axis=0)             # (C, K, M, 2)
    mean = st[..., 0] / count
    # TODO(synk): use a centered/Welford accumulation for pathologically
    #             low-variance channels; max(.,0) guards the cancellation.
    var = jnp.maximum(st[..., 1] / count - mean * mean, 0.0)
    inv = jax.lax.rsqrt(var + norm_eps)
    mean4 = mean[..., None]                                       # (C, K, M, 1)
    inv4 = inv[..., None]

    # --- Kernel 2: normalize + clamp, full (C,K,M,T) slab per batch item ------
    slab = C * K * M * T * 4
    vmem2 = int(min(64 * 2**20, max(32 * 2**20, 6 * slab)))
    y5 = pl.pallas_call(
        functools.partial(_norm_kernel, clamp=clamp),
        grid=(B,),
        in_specs=[pl.BlockSpec((C, K, M, T), lambda b: (b, 0, 0, 0)),
                  pl.BlockSpec((C, K, M, 1), lambda b: (0, 0, 0, 0)),
                  pl.BlockSpec((C, K, M, 1), lambda b: (0, 0, 0, 0))],
        out_specs=pl.BlockSpec((None, K, C, M, T), lambda b: (b, 0, 0, 0, 0)),
        out_shape=jax.ShapeDtypeStruct((B, K, C, M, T), jnp.float32),
        compiler_params=pltpu.CompilerParams(
            dimension_semantics=("parallel",),
            vmem_limit_bytes=vmem2),
    )(xc, mean4, inv4)

    # (B, K, C, M, T) -> (B, K*C, M, T): contiguous merge, free.  Channel order
    # matches torch.cat((x, deltas, delta_deltas), dim=1).
    return y5.reshape(B, K * C, M, T), seq_len


# ----------------------------------------------------------------------------
# Pure-JAX reference (mirrors the PyTorch forward) for a correctness check.
# ----------------------------------------------------------------------------
def _reference(x, fbanks, add_deltas, add_delta_deltas, mel_eps, norm_eps, clamp):
    power = jnp.sum(x ** 2, axis=-1)                    # (B, C, T, F)
    mel = jnp.log(power @ fbanks + mel_eps)             # (B, C, T, M)
    xm = jnp.swapaxes(mel, -2, -1)                      # (B, C, M, T)

    def deltas(z):
        zp = jnp.pad(z, ((0, 0), (0, 0), (0, 0), (2, 2)), mode='edge')
        k = np.arange(-2, 3, dtype=np.float32)
        t = z.shape[-1]
        return sum(float(k[i]) * zp[..., i:i + t] for i in range(5)) / 10.0

    chans = [xm]
    d = deltas(xm)
    if add_deltas:
        chans.append(d)
    if add_delta_deltas:
        chans.append(deltas(d))
    y = jnp.concatenate(chans, axis=1)                  # (B, C_out, M, T)
    mean = jnp.mean(y, axis=(0, 3), keepdims=True)
    var = jnp.mean(y * y, axis=(0, 3), keepdims=True) - mean ** 2
    y = (y - mean) * jax.lax.rsqrt(var + norm_eps)
    return jnp.clip(y, -clamp, clamp)


if __name__ == "__main__":
    sample_rate, stft_size, n_mels = 16000, 256, 32
    B, C, T = 2, 1, 16
    F = stft_size // 2 + 1                              # 129

    key = jax.random.PRNGKey(0)
    x = jax.random.normal(key, (B, C, T, F, 2), dtype=jnp.float32)
    fbanks = make_mel_weights(sample_rate, stft_size, n_mels)   # (F, M)

    out, _ = normalized_logmel_extractor(
        x, fbanks, add_deltas=True, add_delta_deltas=True)
    out = jax.block_until_ready(out)
    assert out.shape == (B, 3, n_mels, T), out.shape

    ref = _reference(x, fbanks, True, True, 1e-12, 1e-5, 6.0)
    np.testing.assert_allclose(np.asarray(out), np.asarray(ref),
                               rtol=2e-3, atol=2e-3)
    print("KERNEL_OK")
</pallas_src>

<mosaic_0001>
module attributes {stable_mosaic.version = 11 : i64} {
  func.func @_melspec_kernel(%arg0: i32, %arg1: memref<1x16x258xf32, #tpu.memory_space<vmem>>, %arg2: memref<32x258xf32, #tpu.memory_space<vmem>>, %arg3: memref<1x16xi32, #tpu.memory_space<vmem>>, %arg4: memref<1x3x32x16xf32, #tpu.memory_space<vmem>>, %arg5: memref<1x3x32x2xf32, #tpu.memory_space<vmem>>) attributes {dimension_semantics = [#tpu.dimension_semantics<parallel>], iteration_bounds = array<i64: 2>, scalar_prefetch = 0 : i64, scratch_operands = 0 : i64, tpu.core_type = #tpu.core_type<tc>, window_params = [{transform_indices = @transform_0, window_bounds = array<i64: 1, 16, 258>}, {pipeline_mode = #tpu.pipeline_mode<synchronous>, transform_indices = @transform_1, window_bounds = array<i64: 32, 258>}, {pipeline_mode = #tpu.pipeline_mode<synchronous>, transform_indices = @transform_2, window_bounds = array<i64: 1, 16>}, {transform_indices = @transform_3, window_bounds = array<i64: 1, 3, 32, 16>}, {transform_indices = @transform_4, window_bounds = array<i64: 1, 3, 32, 2>}]} {
    %c0 = arith.constant 0 : index
    %c0_0 = arith.constant 0 : index
    %c0_1 = arith.constant 0 : index
    %0 = vector.load %arg1[%c0, %c0_0, %c0_1] : memref<1x16x258xf32, #tpu.memory_space<vmem>>, vector<1x16x258xf32>
    %1 = arith.mulf %0, %0 : vector<1x16x258xf32>
    %2 = vector.shape_cast %1 : vector<1x16x258xf32> to vector<16x258xf32>
    %c0_2 = arith.constant 0 : index
    %c0_3 = arith.constant 0 : index
    %3 = vector.load %arg2[%c0_2, %c0_3] : memref<32x258xf32, #tpu.memory_space<vmem>>, vector<32x258xf32>
    %cst = arith.constant dense<0.000000e+00> : vector<32x16xf32>
    %4 = tpu.matmul %3, %2, %cst {dimension_numbers = #tpu.dot_dimension_numbers<[1], [1], [0], [0], [0, 0, 1, 0], [], []>} : vector<32x258xf32>, vector<16x258xf32>, vector<32x16xf32> -> vector<32x16xf32>
    %cst_4 = arith.constant 9.99999996E-13 : f32
    %5 = vector.broadcast %cst_4 : f32 to vector<32x16xf32>
    %6 = arith.addf %4, %5 : vector<32x16xf32>
    %7 = math.log %6 : vector<32x16xf32>
    %c0_5 = arith.constant 0 : index
    %c0_6 = arith.constant 0 : index
    %8 = vector.load %arg3[%c0_5, %c0_6] : memref<1x16xi32, #tpu.memory_space<vmem>>, vector<1x16xi32>
    %9 = vector.extract_strided_slice %7 {offsets = [0, 1], sizes = [32, 15], strides = [1, 1]} : vector<32x16xf32> to vector<32x15xf32>
    %10 = vector.extract_strided_slice %7 {offsets = [0, 0], sizes = [32, 1], strides = [1, 1]} : vector<32x16xf32> to vector<32x1xf32>
    %11 = tpu.concatenate %9, %10 in 1 : vector<32x15xf32>, vector<32x1xf32> -> vector<32x16xf32>
    %12 = vector.extract_strided_slice %7 {offsets = [0, 2], sizes = [32, 14], strides = [1, 1]} : vector<32x16xf32> to vector<32x14xf32>
    %13 = vector.extract_strided_slice %7 {offsets = [0, 0], sizes = [32, 2], strides = [1, 1]} : vector<32x16xf32> to vector<32x2xf32>
    %14 = tpu.concatenate %12, %13 in 1 : vector<32x14xf32>, vector<32x2xf32> -> vector<32x16xf32>
    %15 = vector.extract_strided_slice %7 {offsets = [0, 15], sizes = [32, 1], strides = [1, 1]} : vector<32x16xf32> to vector<32x1xf32>
    %16 = vector.extract_strided_slice %7 {offsets = [0, 0], sizes = [32, 15], strides = [1, 1]} : vector<32x16xf32> to vector<32x15xf32>
    %17 = tpu.concatenate %15, %16 in 1 : vector<32x1xf32>, vector<32x15xf32> -> vector<32x16xf32>
    %18 = vector.extract_strided_slice %7 {offsets = [0, 14], sizes = [32, 2], strides = [1, 1]} : vector<32x16xf32> to vector<32x2xf32>
    %19 = vector.extract_strided_slice %7 {offsets = [0, 0], sizes = [32, 14], strides = [1, 1]} : vector<32x16xf32> to vector<32x14xf32>
    %20 = tpu.concatenate %18, %19 in 1 : vector<32x2xf32>, vector<32x14xf32> -> vector<32x16xf32>
    %c15_i32 = arith.constant 15 : i32
    %21 = vector.broadcast %c15_i32 : i32 to vector<1x16xi32>
    %22 = arith.cmpi eq, %8, %21 : vector<1x16xi32>
    %23 = vector.shape_cast %22 : vector<1x16xi1> to vector<1x16xi1>
    %24 = vector.broadcast %23 : vector<1x16xi1> to vector<32x16xi1>
    %25 = arith.select %24, %7, %11 : vector<32x16xi1>, vector<32x16xf32>
    %c15_i32_7 = arith.constant 15 : i32
    %26 = vector.broadcast %c15_i32_7 : i32 to vector<1x16xi32>
    %27 = arith.cmpi eq, %8, %26 : vector<1x16xi32>
    %c14_i32 = arith.constant 14 : i32
    %28 = vector.broadcast %c14_i32 : i32 to vector<1x16xi32>
    %29 = arith.cmpi sge, %8, %28 : vector<1x16xi32>
    %30 = vector.shape_cast %29 : vector<1x16xi1> to vector<1x16xi1>
    %31 = vector.broadcast %30 : vector<1x16xi1> to vector<32x16xi1>
    %32 = arith.select %31, %11, %14 : vector<32x16xi1>, vector<32x16xf32>
    %33 = vector.shape_cast %27 : vector<1x16xi1> to vector<1x16xi1>
    %34 = vector.broadcast %33 : vector<1x16xi1> to vector<32x16xi1>
    %35 = arith.select %34, %7, %32 : vector<32x16xi1>, vector<32x16xf32>
    %c0_i32 = arith.constant 0 : i32
    %36 = vector.broadcast %c0_i32 : i32 to vector<1x16xi32>
    %37 = arith.cmpi eq, %8, %36 : vector<1x16xi32>
    %38 = vector.shape_cast %37 : vector<1x16xi1> to vector<1x16xi1>
    %39 = vector.broadcast %38 : vector<1x16xi1> to vector<32x16xi1>
    %40 = arith.select %39, %7, %17 : vector<32x16xi1>, vector<32x16xf32>
    %c0_i32_8 = arith.constant 0 : i32
    %41 = vector.broadcast %c0_i32_8 : i32 to vector<1x16xi32>
    %42 = arith.cmpi eq, %8, %41 : vector<1x16xi32>
    %c1_i32 = arith.constant 1 : i32
    %43 = vector.broadcast %c1_i32 : i32 to vector<1x16xi32>
    %44 = arith.cmpi sle, %8, %43 : vector<1x16xi32>
    %45 = vector.shape_cast %44 : vector<1x16xi1> to vector<1x16xi1>
    %46 = vector.broadcast %45 : vector<1x16xi1> to vector<32x16xi1>
    %47 = arith.select %46, %17, %20 : vector<32x16xi1>, vector<32x16xf32>
    %48 = vector.shape_cast %42 : vector<1x16xi1> to vector<1x16xi1>
    %49 = vector.broadcast %48 : vector<1x16xi1> to vector<32x16xi1>
    %50 = arith.select %49, %7, %47 : vector<32x16xi1>, vector<32x16xf32>
    %51 = arith.subf %25, %40 : vector<32x16xf32>
    %52 = arith.subf %35, %50 : vector<32x16xf32>
    %cst_9 = arith.constant 2.000000e+00 : f32
    %53 = vector.broadcast %cst_9 : f32 to vector<32x16xf32>
    %54 = arith.mulf %53, %52 : vector<32x16xf32>
    %55 = arith.addf %51, %54 : vector<32x16xf32>
    %cst_10 = arith.constant 1.000000e-01 : f32
    %56 = vector.broadcast %cst_10 : f32 to vector<32x16xf32>
    %57 = arith.mulf %55, %56 : vector<32x16xf32>
    %58 = vector.extract_strided_slice %57 {offsets = [0, 1], sizes = [32, 15], strides = [1, 1]} : vector<32x16xf32> to vector<32x15xf32>
    %59 = vector.extract_strided_slice %57 {offsets = [0, 0], sizes = [32, 1], strides = [1, 1]} : vector<32x16xf32> to vector<32x1xf32>
    %60 = tpu.concatenate %58, %59 in 1 : vector<32x15xf32>, vector<32x1xf32> -> vector<32x16xf32>
    %61 = vector.extract_strided_slice %57 {offsets = [0, 2], sizes = [32, 14], strides = [1, 1]} : vector<32x16xf32> to vector<32x14xf32>
    %62 = vector.extract_strided_slice %57 {offsets = [0, 0], sizes = [32, 2], strides = [1, 1]} : vector<32x16xf32> to vector<32x2xf32>
    %63 = tpu.concatenate %61, %62 in 1 : vector<32x14xf32>, vector<32x2xf32> -> vector<32x16xf32>
    %64 = vector.extract_strided_slice %57 {offsets = [0, 15], sizes = [32, 1], strides = [1, 1]} : vector<32x16xf32> to vector<32x1xf32>
    %65 = vector.extract_strided_slice %57 {offsets = [0, 0], sizes = [32, 15], strides = [1, 1]} : vector<32x16xf32> to vector<32x15xf32>
    %66 = tpu.concatenate %64, %65 in 1 : vector<32x1xf32>, vector<32x15xf32> -> vector<32x16xf32>
    %67 = vector.extract_strided_slice %57 {offsets = [0, 14], sizes = [32, 2], strides = [1, 1]} : vector<32x16xf32> to vector<32x2xf32>
    %68 = vector.extract_strided_slice %57 {offsets = [0, 0], sizes = [32, 14], strides = [1, 1]} : vector<32x16xf32> to vector<32x14xf32>
    %69 = tpu.concatenate %67, %68 in 1 : vector<32x2xf32>, vector<32x14xf32> -> vector<32x16xf32>
    %c15_i32_11 = arith.constant 15 : i32
    %70 = vector.broadcast %c15_i32_11 : i32 to vector<1x16xi32>
    %71 = arith.cmpi eq, %8, %70 : vector<1x16xi32>
    %72 = vector.shape_cast %71 : vector<1x16xi1> to vector<1x16xi1>
    %73 = vector.broadcast %72 : vector<1x16xi1> to vector<32x16xi1>
    %74 = arith.select %73, %57, %60 : vector<32x16xi1>, vector<32x16xf32>
    %c15_i32_12 = arith.constant 15 : i32
    %75 = vector.broadcast %c15_i32_12 : i32 to vector<1x16xi32>
    %76 = arith.cmpi eq, %8, %75 : vector<1x16xi32>
    %c14_i32_13 = arith.constant 14 : i32
    %77 = vector.broadcast %c14_i32_13 : i32 to vector<1x16xi32>
    %78 = arith.cmpi sge, %8, %77 : vector<1x16xi32>
    %79 = vector.shape_cast %78 : vector<1x16xi1> to vector<1x16xi1>
    %80 = vector.broadcast %79 : vector<1x16xi1> to vector<32x16xi1>
    %81 = arith.select %80, %60, %63 : vector<32x16xi1>, vector<32x16xf32>
    %82 = vector.shape_cast %76 : vector<1x16xi1> to vector<1x16xi1>
    %83 = vector.broadcast %82 : vector<1x16xi1> to vector<32x16xi1>
    %84 = arith.select %83, %57, %81 : vector<32x16xi1>, vector<32x16xf32>
    %c0_i32_14 = arith.constant 0 : i32
    %85 = vector.broadcast %c0_i32_14 : i32 to vector<1x16xi32>
    %86 = arith.cmpi eq, %8, %85 : vector<1x16xi32>
    %87 = vector.shape_cast %86 : vector<1x16xi1> to vector<1x16xi1>
    %88 = vector.broadcast %87 : vector<1x16xi1> to vector<32x16xi1>
    %89 = arith.select %88, %57, %66 : vector<32x16xi1>, vector<32x16xf32>
    %c0_i32_15 = arith.constant 0 : i32
    %90 = vector.broadcast %c0_i32_15 : i32 to vector<1x16xi32>
    %91 = arith.cmpi eq, %8, %90 : vector<1x16xi32>
    %c1_i32_16 = arith.constant 1 : i32
    %92 = vector.broadcast %c1_i32_16 : i32 to vector<1x16xi32>
    %93 = arith.cmpi sle, %8, %92 : vector<1x16xi32>
    %94 = vector.shape_cast %93 : vector<1x16xi1> to vector<1x16xi1>
    %95 = vector.broadcast %94 : vector<1x16xi1> to vector<32x16xi1>
    %96 = arith.select %95, %66, %69 : vector<32x16xi1>, vector<32x16xf32>
    %97 = vector.shape_cast %91 : vector<1x16xi1> to vector<1x16xi1>
    %98 = vector.broadcast %97 : vector<1x16xi1> to vector<32x16xi1>
    %99 = arith.select %98, %57, %96 : vector<32x16xi1>, vector<32x16xf32>
    %100 = arith.subf %74, %89 : vector<32x16xf32>
    %101 = arith.subf %84, %99 : vector<32x16xf32>
    %cst_17 = arith.constant 2.000000e+00 : f32
    %102 = vector.broadcast %cst_17 : f32 to vector<32x16xf32>
    %103 = arith.mulf %102, %101 : vector<32x16xf32>
    %104 = arith.addf %100, %103 : vector<32x16xf32>
    %cst_18 = arith.constant 1.000000e-01 : f32
    %105 = vector.broadcast %cst_18 : f32 to vector<32x16xf32>
    %106 = arith.mulf %104, %105 : vector<32x16xf32>
    %c0_19 = arith.constant 0 : index
    %c0_20 = arith.constant 0 : index
    %c0_21 = arith.constant 0 : index
    %c0_22 = arith.constant 0 : index
    %107 = vector.load %arg4[%c0_19, %c0_20, %c0_21, %c0_22] : memref<1x3x32x16xf32, #tpu.memory_space<vmem>>, vector<1x1x32x16xf32>
    %108 = vector.shape_cast %107 : vector<1x1x32x16xf32> to vector<32x16xf32>
    %109 = vector.shape_cast %7 : vector<32x16xf32> to vector<1x1x32x16xf32>
    tpu.vector_store %arg4[%c0_19, %c0_20, %c0_21, %c0_22], %109 {strides = array<i32>} : memref<1x3x32x16xf32, #tpu.memory_space<vmem>>, vector<1x1x32x16xf32>,
    %cst_23 = arith.constant dense<0.000000e+00> : vector<32xf32>
    %110 = vector.multi_reduction <add>, %7, %cst_23 [1] : vector<32x16xf32> to vector<32xf32>
    %111 = vector.shape_cast %110 : vector<32xf32> to vector<32x1xf32>
    %112 = arith.mulf %7, %7 : vector<32x16xf32>
    %cst_24 = arith.constant dense<0.000000e+00> : vector<32xf32>
    %113 = vector.multi_reduction <add>, %112, %cst_24 [1] : vector<32x16xf32> to vector<32xf32>
    %114 = vector.shape_cast %113 : vector<32xf32> to vector<32x1xf32>
    %115 = tpu.concatenate %111, %114 in 1 : vector<32x1xf32>, vector<32x1xf32> -> vector<32x2xf32>
    %c0_25 = arith.constant 0 : index
    %c0_26 = arith.constant 0 : index
    %c0_27 = arith.constant 0 : index
    %c0_28 = arith.constant 0 : index
    %116 = vector.load %arg5[%c0_25, %c0_26, %c0_27, %c0_28] : memref<1x3x32x2xf32, #tpu.memory_space<vmem>>, vector<1x1x32x2xf32>
    %117 = vector.shape_cast %116 : vector<1x1x32x2xf32> to vector<32x2xf32>
    %118 = vector.shape_cast %115 : vector<32x2xf32> to vector<1x1x32x2xf32>
    tpu.vector_store %arg5[%c0_25, %c0_26, %c0_27, %c0_28], %118 {strides = array<i32>} : memref<1x3x32x2xf32, #tpu.memory_space<vmem>>, vector<1x1x32x2xf32>,
    %c0_29 = arith.constant 0 : index
    %c1 = arith.constant 1 : index
    %c0_30 = arith.constant 0 : index
    %c0_31 = arith.constant 0 : index
    %119 = vector.load %arg4[%c0_29, %c1, %c0_30, %c0_31] : memref<1x3x32x16xf32, #tpu.memory_space<vmem>>, vector<1x1x32x16xf32>
    %120 = vector.shape_cast %119 : vector<1x1x32x16xf32> to vector<32x16xf32>
    %121 = vector.shape_cast %57 : vector<32x16xf32> to vector<1x1x32x16xf32>
    tpu.vector_store %arg4[%c0_29, %c1, %c0_30, %c0_31], %121 {strides = array<i32>} : memref<1x3x32x16xf32, #tpu.memory_space<vmem>>, vector<1x1x32x16xf32>,
    %cst_32 = arith.constant dense<0.000000e+00> : vector<32xf32>
    %122 = vector.multi_reduction <add>, %57, %cst_32 [1] : vector<32x16xf32> to vector<32xf32>
    %123 = vector.shape_cast %122 : vector<32xf32> to vector<32x1xf32>
    %124 = arith.mulf %57, %57 : vector<32x16xf32>
    %cst_33 = arith.constant dense<0.000000e+00> : vector<32xf32>
    %125 = vector.multi_reduction <add>, %124, %cst_33 [1] : vector<32x16xf32> to vector<32xf32>
    %126 = vector.shape_cast %125 : vector<32xf32> to vector<32x1xf32>
    %127 = tpu.concatenate %123, %126 in 1 : vector<32x1xf32>, vector<32x1xf32> -> vector<32x2xf32>
    %c0_34 = arith.constant 0 : index
    %c1_35 = arith.constant 1 : index
    %c0_36 = arith.constant 0 : index
    %c0_37 = arith.constant 0 : index
    %128 = vector.load %arg5[%c0_34, %c1_35, %c0_36, %c0_37] : memref<1x3x32x2xf32, #tpu.memory_space<vmem>>, vector<1x1x32x2xf32>
    %129 = vector.shape_cast %128 : vector<1x1x32x2xf32> to vector<32x2xf32>
    %130 = vector.shape_cast %127 : vector<32x2xf32> to vector<1x1x32x2xf32>
    tpu.vector_store %arg5[%c0_34, %c1_35, %c0_36, %c0_37], %130 {strides = array<i32>} : memref<1x3x32x2xf32, #tpu.memory_space<vmem>>, vector<1x1x32x2xf32>,
    %c0_38 = arith.constant 0 : index
    %c2 = arith.constant 2 : index
    %c0_39 = arith.constant 0 : index
    %c0_40 = arith.constant 0 : index
    %131 = vector.load %arg4[%c0_38, %c2, %c0_39, %c0_40] : memref<1x3x32x16xf32, #tpu.memory_space<vmem>>, vector<1x1x32x16xf32>
    %132 = vector.shape_cast %131 : vector<1x1x32x16xf32> to vector<32x16xf32>
    %133 = vector.shape_cast %106 : vector<32x16xf32> to vector<1x1x32x16xf32>
    tpu.vector_store %arg4[%c0_38, %c2, %c0_39, %c0_40], %133 {strides = array<i32>} : memref<1x3x32x16xf32, #tpu.memory_space<vmem>>, vector<1x1x32x16xf32>,
    %cst_41 = arith.constant dense<0.000000e+00> : vector<32xf32>
    %134 = vector.multi_reduction <add>, %106, %cst_41 [1] : vector<32x16xf32> to vector<32xf32>
    %135 = vector.shape_cast %134 : vector<32xf32> to vector<32x1xf32>
    %136 = arith.mulf %106, %106 : vector<32x16xf32>
    %cst_42 = arith.constant dense<0.000000e+00> : vector<32xf32>
    %137 = vector.multi_reduction <add>, %136, %cst_42 [1] : vector<32x16xf32> to vector<32xf32>
    %138 = vector.shape_cast %137 : vector<32xf32> to vector<32x1xf32>
    %139 = tpu.concatenate %135, %138 in 1 : vector<32x1xf32>, vector<32x1xf32> -> vector<32x2xf32>
    %c0_43 = arith.constant 0 : index
    %c2_44 = arith.constant 2 : index
    %c0_45 = arith.constant 0 : index
    %c0_46 = arith.constant 0 : index
    %140 = vector.load %arg5[%c0_43, %c2_44, %c0_45, %c0_46] : memref<1x3x32x2xf32, #tpu.memory_space<vmem>>, vector<1x1x32x2xf32>
    %141 = vector.shape_cast %140 : vector<1x1x32x2xf32> to vector<32x2xf32>
    %142 = vector.shape_cast %139 : vector<32x2xf32> to vector<1x1x32x2xf32>
    tpu.vector_store %arg5[%c0_43, %c2_44, %c0_45, %c0_46], %142 {strides = array<i32>} : memref<1x3x32x2xf32, #tpu.memory_space<vmem>>, vector<1x1x32x2xf32>,
    return
  }
  func.func @transform_0(%arg0: i32) -> (i32, i32, i32) {
    %c0_i32 = arith.constant 0 : i32
    %c0_i32_0 = arith.constant 0 : i32
    %c0_i32_1 = arith.constant 0 : i32
    return %arg0, %c0_i32, %c0_i32_0 : i32, i32, i32
  }
  func.func @transform_1(%arg0: i32) -> (i32, i32) {
    %c0_i32 = arith.constant 0 : i32
    %c0_i32_0 = arith.constant 0 : i32
    %c0_i32_1 = arith.constant 0 : i32
    return %c0_i32, %c0_i32_0 : i32, i32
  }
  func.func @transform_2(%arg0: i32) -> (i32, i32) {
    %c0_i32 = arith.constant 0 : i32
    %c0_i32_0 = arith.constant 0 : i32
    %c0_i32_1 = arith.constant 0 : i32
    return %c0_i32, %c0_i32_0 : i32, i32
  }
  func.func @transform_3(%arg0: i32) -> (i32, i32, i32, i32) {
    %c0_i32 = arith.constant 0 : i32
    %c0_i32_0 = arith.constant 0 : i32
    %c0_i32_1 = arith.constant 0 : i32
    %c0_i32_2 = arith.constant 0 : i32
    return %arg0, %c0_i32, %c0_i32_0, %c0_i32_1 : i32, i32, i32, i32
  }
  func.func @transform_4(%arg0: i32) -> (i32, i32, i32, i32) {
    %c0_i32 = arith.constant 0 : i32
    %c0_i32_0 = arith.constant 0 : i32
    %c0_i32_1 = arith.constant 0 : i32
    %c0_i32_2 = arith.constant 0 : i32
    return %arg0, %c0_i32, %c0_i32_0, %c0_i32_1 : i32, i32, i32, i32
  }
}

</mosaic_0001>

<llo_original>
// kernel: tpu_custom_call.1
$region0: #{tpu_custom_call.1}
  #allocation0 [shape = 'u32[]', space=smem, size = 0x4, offset = 0x4, fixed_abs, tag = 'smem constant byte address 0x4 - core index']
  #allocation1 [shape = 'u32[144,128]{1,0:T(1,128)}', space=vmem, size = 0x12000, scoped, tag = 'internal scratch']
  %s0 = inlined_call_operand.hbm [shape: f32[2,16,258], index: 0, kind: input, shape index: {}]
  %s1 = inlined_call_operand.hbm [shape: f32[32,258], index: 1, kind: input, shape index: {}]
  %s2 = inlined_call_operand.vmem [shape: s32[1,16], index: 2, kind: input, shape index: {}]
  %s3 = inlined_call_operand.vmem [shape: f32[2,3,32,16], index: 3, kind: output, shape index: {0}]
  %s4 = inlined_call_operand.vmem [shape: f32[2,3,32,2], index: 4, kind: output, shape index: {1}]
  %5 = xla_tuple %s3, %s4
  %s6 = sld [smem:[#allocation0]]
  $region61: #{tpu_custom_call.1} parent=0
    _
  %s8 = ssub.s32 1, %s6
  %s9 = scalar_select 0, %s8, %s6
  $region1: #{tpu_custom_call.1} parent=0
    #allocation2 [shape = 'u8[49152]{0}', space=vmem, size = 0xc000, scoped, tag = 'input window, operand 0']
    #allocation3 [shape = 's32[2]{0}', space=sflag, size = 0x8, scoped, tag = 'scoped memory for tpu_custom_call.1']
    #allocation4 [shape = 'u8[49152]{0}', space=vmem, size = 0xc000, scoped, tag = 'input window, operand 1, single buffered']
    #allocation5 [shape = 's32[1]{0}', space=sflag, size = 0x4, scoped, tag = 'scoped memory for tpu_custom_call.1']
    %10 = vsyncpa [#allocation3], 0
    %s11 = scalar_lea.sflag [#allocation3], 1
    %12 = vsyncpa %s11, 0
    %13 = vsyncpa [#allocation5], 0
    loop: start=0, step=1, limit=4
    $region2: #{tpu_custom_call.1} parent=1 // loop_pre_header
      _
    $region3: #{tpu_custom_call.1} parent=1 // loop_header
      %s15 = sphi 0, %s19
      %p16 = scmp.ge.s32.totalorder %s15, 4
      %s25 = sphi 0, %s27
      %s28 = sphi 0, %s25
      %s29 = sphi 0, %s28
      %s45 = sphi 0, %s29
      %s49 = sphi 0, %s49
      %s51 = sphi 0, %s49
      %s52 = sphi 0, %s51
      %s66 = sphi 0, %s52
      %s70 = sphi 0, %s70
      %s72 = sphi 0, %s70
      %s73 = sphi 0, %s72
      %s87 = sphi 0, %s73
      %s93 = sphi 0, %s95
      %s96 = sphi 0, %s93
      %s97 = sphi 0, %s96
      %s113 = sphi 0, %s97
      %s119 = sphi 0, %s121
      %s122 = sphi 0, %s119
      %s123 = sphi 0, %s122
      %s139 = sphi 0, %s123
    $region4: #{tpu_custom_call.1} parent=1 // loop_header_branch
      %18 = sbr.rel (%p16) target = $region8
    $region5: #{tpu_custom_call.1} parent=1 // loop_body
      %s20 = ssub.s32 %s15, 1
      %s21 = ssub.s32 %s15, 2
      %s22 = sadd.s32 %s15, 1
      %s23 = ssub.s32 %s15, %s22
      %p24 = scmp.eq.s32.totalorder %s23, 0
      %s26 = sadd.s32 %s25, 1
      %s27 = scalar_select %p24, %s25, %s26
      %p30 = pneg %p24
      %p31 = scmp.eq.s32.totalorder %s15, 1
      %p32 = por %p30, %p31
      %p33 = scmp.ne.s32.totalorder %s25, %s28
      %p34 = scmp.eq.s32.totalorder %s15, 0
      %p35 = por %p33, %p34
      %p36 = scmp.ne.s32.totalorder %s25, %s28
      %p37 = scmp.eq.s32.totalorder %s20, 1
      %p38 = por %p36, %p37
      %p39 = scmp.ne.s32.totalorder %s28, %s29
      %p40 = scmp.eq.s32.totalorder %s20, 0
      %p41 = por %p39, %p40
      %p42 = scmp.ne.s32.totalorder %s28, %s29
      %p43 = scmp.eq.s32.totalorder %s21, 1
      %p44 = por %p42, %p43
      %p46 = scmp.ne.s32.totalorder %s29, %s45
      %p47 = scmp.eq.s32.totalorder %s21, 0
      %p48 = por %p46, %p47
      %s50 = sadd.s32 %s49, 1
      %p53 = scmp.eq.s32.totalorder %s15, 1
      %p54 = scmp.ne.s32.totalorder %s49, %s51
      %p55 = scmp.eq.s32.totalorder %s15, 0
      %p56 = por %p54, %p55
      %p57 = scmp.ne.s32.totalorder %s49, %s51
      %p58 = scmp.eq.s32.totalorder %s20, 1
      %p59 = por %p57, %p58
      %p60 = scmp.ne.s32.totalorder %s51, %s52
      %p61 = scmp.eq.s32.totalorder %s20, 0
      %p62 = por %p60, %p61
      %p63 = scmp.ne.s32.totalorder %s51, %s52
      %p64 = scmp.eq.s32.totalorder %s21, 1
      %p65 = por %p63, %p64
      %p67 = scmp.ne.s32.totalorder %s52, %s66
      %p68 = scmp.eq.s32.totalorder %s21, 0
      %p69 = por %p67, %p68
      %s71 = sadd.s32 %s70, 1
      %p74 = scmp.eq.s32.totalorder %s15, 1
      %p75 = scmp.ne.s32.totalorder %s70, %s72
      %p76 = scmp.eq.s32.totalorder %s15, 0
      %p77 = por %p75, %p76
      %p78 = scmp.ne.s32.totalorder %s70, %s72
      %p79 = scmp.eq.s32.totalorder %s20, 1
      %p80 = por %p78, %p79
      %p81 = scmp.ne.s32.totalorder %s72, %s73
      %p82 = scmp.eq.s32.totalorder %s20, 0
      %p83 = por %p81, %p82
      %p84 = scmp.ne.s32.totalorder %s72, %s73
      %p85 = scmp.eq.s32.totalorder %s21, 1
      %p86 = por %p84, %p85
      %p88 = scmp.ne.s32.totalorder %s73, %s87
      %p89 = scmp.eq.s32.totalorder %s21, 0
      %p90 = por %p88, %p89
      %s91 = ssub.s32 %s15, %s22
      %p92 = scmp.eq.s32.totalorder %s91, 0
      %s94 = sadd.s32 %s93, 1
      %s95 = scalar_select %p92, %s93, %s94
      %p98 = pneg %p92
      %p99 = scmp.eq.s32.totalorder %s15, 1
      %p100 = por %p98, %p99
      %p101 = scmp.ne.s32.totalorder %s93, %s96
      %p102 = scmp.eq.s32.totalorder %s15, 0
      %p103 = por %p101, %p102
      %p104 = scmp.ne.s32.totalorder %s93, %s96
      %p105 = scmp.eq.s32.totalorder %s20, 1
      %p106 = por %p104, %p105
      %p107 = scmp.ne.s32.totalorder %s96, %s97
      %p108 = scmp.eq.s32.totalorder %s20, 0
      %p109 = por %p107, %p108
      %p110 = scmp.ne.s32.totalorder %s96, %s97
      %p111 = scmp.eq.s32.totalorder %s21, 1
      %p112 = por %p110, %p111
      %p114 = scmp.ne.s32.totalorder %s97, %s113
      %p115 = scmp.eq.s32.totalorder %s21, 0
      %p116 = por %p114, %p115
      %s117 = ssub.s32 %s15, %s22
      %p118 = scmp.eq.s32.totalorder %s117, 0
      %s120 = sadd.s32 %s119, 1
      %s121 = scalar_select %p118, %s119, %s120
      %p124 = pneg %p118
      %p125 = scmp.eq.s32.totalorder %s15, 1
      %p126 = por %p124, %p125
      %p127 = scmp.ne.s32.totalorder %s119, %s122
      %p128 = scmp.eq.s32.totalorder %s15, 0
      %p129 = por %p127, %p128
      %p130 = scmp.ne.s32.totalorder %s119, %s122
      %p131 = scmp.eq.s32.totalorder %s20, 1
      %p132 = por %p130, %p131
      %p133 = scmp.ne.s32.totalorder %s122, %s123
      %p134 = scmp.eq.s32.totalorder %s20, 0
      %p135 = por %p133, %p134
      %p136 = scmp.ne.s32.totalorder %s122, %s123
      %p137 = scmp.eq.s32.totalorder %s21, 1
      %p138 = por %p136, %p137
      %p140 = scmp.ne.s32.totalorder %s123, %s139
      %p141 = scmp.eq.s32.totalorder %s21, 0
      %p142 = por %p140, %p141
      %p143 = scmp.le.s32.totalorder 1, %s15
      %p144 = scmp.lt.s32.totalorder %s15, 3
      %p145 = pnand %p143, %p144
      %p146 = pneg %p145
      // Predicated region
      $region9: #{tpu_custom_call.1} parent=5 // pred_check
        _
      $region10: #{tpu_custom_call.1} parent=5 // pred_check_branch
        %148 = sbr.rel (%p145) target = $region12
      $region11: #{tpu_custom_call.1} parent=5 // pred_region
        %s149 = ssub.s32 %s15, 1
        // Predicated region
        $region13: #{tpu_custom_call.1} parent=11 // pred_check
          %p150 = pneg %p62
        $region14: #{tpu_custom_call.1} parent=11 // pred_check_branch
          %152 = sbr.rel (%p150) target = $region16
        $region15: #{tpu_custom_call.1} parent=11 // pred_region
          %s154 = ssub.s32 1536, 1536
          %155 = vsyncadd [#allocation5], %s154
          %s156 = sshll.u32 [#allocation4], 4
          %s157 = int_to_ptr.vmem [resolvable:$true] %s156
          %162 = dma.hbm_to_vmem [thread:$0]  %s1, 1536, %s157, [#allocation5], 384, 384, 24
        $region16: #{tpu_custom_call.1} parent=11 // pred_fallthru
          _
        // Predicated region
        $region17: #{tpu_custom_call.1} parent=11 // pred_check
          %p163 = pneg %p83
        $region18: #{tpu_custom_call.1} parent=11 // pred_check_branch
          %165 = sbr.rel (%p163) target = $region20
        $region19: #{tpu_custom_call.1} parent=11 // pred_region
          _
        $region20: #{tpu_custom_call.1} parent=11 // pred_fallthru
          _
      $region12: #{tpu_custom_call.1} parent=5 // pred_fallthru
        _
      %p166 = scmp.lt.s32.totalorder %s15, 2
      // Predicated region
      $region21: #{tpu_custom_call.1} parent=5 // pred_check
        %p167 = pneg %p166
      $region22: #{tpu_custom_call.1} parent=5 // pred_check_branch
        %169 = sbr.rel (%p167) target = $region24
      $region23: #{tpu_custom_call.1} parent=5 // pred_region
        // Predicated region
        $region25: #{tpu_custom_call.1} parent=23 // pred_check
          %p170 = pneg %p35
        $region26: #{tpu_custom_call.1} parent=23 // pred_check_branch
          %172 = sbr.rel (%p170) target = $region28
        $region27: #{tpu_custom_call.1} parent=23 // pred_region
          %s173 = sand.u32 %s25, 1
          %s174 = scalar_lea.sflag [#allocation3], %s173
          %s175 = sand.u32 %s25, 1
          %s176 = smul.addr %s175, 48
          %s177 = scalar_lea.vmem [#allocation2], %s176
          %s179 = ssub.s32 768, 768
          %180 = vsyncadd %s174, %s179
          %s181 = smul.addr %s15, 6
          %s182 = smul.addr %s181, 128
          %s183 = scalar_lea.hbm %s0, %s182
          %s184 = sshll.u32 %s177, 4
          %s185 = int_to_ptr.vmem [resolvable:$true] %s184
          %190 = dma.hbm_to_vmem [thread:$0]  %s183, 768, %s185, %s174, 384, 384, 24
        $region28: #{tpu_custom_call.1} parent=23 // pred_fallthru
          _
      $region24: #{tpu_custom_call.1} parent=5 // pred_fallthru
        _
      %p191 = scmp.le.s32.totalorder 1, %s15
      %p192 = scmp.lt.s32.totalorder %s15, 3
      %p193 = pnand %p191, %p192
      %p194 = pneg %p193
      // Predicated region
      $region29: #{tpu_custom_call.1} parent=5 // pred_check
        _
      $region30: #{tpu_custom_call.1} parent=5 // pred_check_branch
        %196 = sbr.rel (%p193) target = $region32
      $region31: #{tpu_custom_call.1} parent=5 // pred_region
        %s197 = ssub.s32 %s15, 1
        %s198 = sand.u32 %s28, 1
        %s199 = scalar_lea.sflag [#allocation3], %s198
        %s200 = sand.u32 %s28, 1
        %s201 = smul.addr %s200, 48
        %s202 = scalar_lea.vmem [#allocation2], %s201
        // Predicated region
        $region33: #{tpu_custom_call.1} parent=31 // pred_check
          %p203 = pneg %p41
        $region34: #{tpu_custom_call.1} parent=31 // pred_check_branch
          %205 = sbr.rel (%p203) target = $region36
        $region35: #{tpu_custom_call.1} parent=31 // pred_region
          %206 = dma.done %s199, 768
        $region36: #{tpu_custom_call.1} parent=31 // pred_fallthru
          _
        // Predicated region
        $region37: #{tpu_custom_call.1} parent=31 // pred_check
          %p207 = pneg %p62
        $region38: #{tpu_custom_call.1} parent=31 // pred_check_branch
          %209 = sbr.rel (%p207) target = $region40
        $region39: #{tpu_custom_call.1} parent=31 // pred_region
          %210 = dma.done [#allocation5], 1536
        $region40: #{tpu_custom_call.1} parent=31 // pred_fallthru
          _
        %s211 = sand.u32 %s28, 1
        %s212 = scalar_lea.sflag [#allocation3], %s211
        %s213 = sand.u32 %s28, 1
        %s214 = smul.addr %s213, 48
        %s215 = scalar_lea.vmem [#allocation2], %s214
        %p216 = pneg %p41
        %p217 = pneg %p38
        %p218 = pneg %p62
        %p219 = pneg %p59
        %p220 = pneg %p83
        %p221 = pneg %p80
        %p222 = pneg %p109
        %p223 = pneg %p106
        %p224 = scmp.lt.s32.totalorder %s20, 1
        %s225 = scalar_select %p224, %s20, 1
        %s226 = smul.addr %s225, 12
        %s227 = smul.addr %s226, 8
        %s228 = scalar_lea.vmem %s3, %s227
        %p229 = pneg %p135
        %p230 = pneg %p132
        %p231 = scmp.lt.s32.totalorder %s20, 1
        %s232 = scalar_select %p231, %s20, 1
        %s233 = smul.addr %s232, 12
        %s234 = smul.addr %s233, 8
        %s235 = scalar_lea.vmem %s4, %s234
        %p236 = scmp.lt.s32.totalorder %s20, 1
        %s237 = scalar_select %p236, %s20, 1
        %s238 = smul.addr %s237, 12
        %s239 = smul.addr %s238, 8
        %s240 = scalar_lea.vmem %s3, %s239
        %p241 = scmp.lt.s32.totalorder %s20, 1
        %s242 = scalar_select %p241, %s20, 1
        %s243 = smul.addr %s242, 12
        %s244 = smul.addr %s243, 8
        %s245 = scalar_lea.vmem %s4, %s244
        %v246 = vld [vmem:[%s202] sm:$0xff]
        %v247 = vld [vmem:[%s202 + $0x8] sm:$0xff]
        %v248 = vld [vmem:[%s202 + $0x10] sm:$0xff]
        %v249 = vld [vmem:[%s202 + $0x18] sm:$0xff]
        %v250 = vld [vmem:[%s202 + $0x20] sm:$0xff]
        %v251 = vld [vmem:[%s202 + $0x28] sm:$0xff]
        %v252 = vmul.f32 %v246, %v246
        %v253 = vmul.f32 %v247, %v247
        %v254 = vmul.f32 %v248, %v248
        %v255 = vmul.f32 %v249, %v249
        %v256 = vmul.f32 %v250, %v250
        %v257 = vmul.f32 %v251, %v251
        %v258 = vld [vmem:[#allocation4] sm:$0xff]
        %v259 = vld [vmem:[#allocation4 + $0x8] sm:$0xff]
        %v260 = vld [vmem:[#allocation4 + $0x10] sm:$0xff]
        %v261 = vld [vmem:[#allocation4 + $0x18] sm:$0xff]
        %v262 = vld [vmem:[#allocation4 + $0x20] sm:$0xff]
        %v263 = vld [vmem:[#allocation4 + $0x28] sm:$0xff]
        %v264 = vld [vmem:[#allocation4 + $0x30] sm:$0xff]
        %v265 = vld [vmem:[#allocation4 + $0x38] sm:$0xff]
        %v266 = vld [vmem:[#allocation4 + $0x40] sm:$0xff]
        %v267 = vld [vmem:[#allocation4 + $0x48] sm:$0xff]
        %v268 = vld [vmem:[#allocation4 + $0x50] sm:$0xff]
        %v269 = vld [vmem:[#allocation4 + $0x58] sm:$0xff]
        %vm270 = vcmask 15360
        %v272 = vsel %vm270, %v260, 0
        %v275 = vsel %vm270, %v263, 0
        %v278 = vsel %vm270, %v266, 0
        %v281 = vsel %vm270, %v269, 0
        %v284 = vsel %vm270, %v254, 0
        %v287 = vsel %vm270, %v257, 0
        %289 = vmatprep.subr.mxu0 %v253
        %290 = vmatpush1.xpose.msra.mxu0 %v252
        %291 = vmatprep.subr.mxu0 %v256
        %292 = vmatpush1.xpose.msra.mxu0 %v255
        %293 = vmatprep.subr.mxu0 0.0
        %294 = vmatpush1.xpose.msra.mxu0 0.0
        %295 = vmatprep.subr.mxu0 0.0
        %296 = vmatpush1.xpose.msra.mxu0 0.0
        %297 = vmatprep.subr.mxu0 0.0
        %298 = vmatpush1.xpose.msra.mxu0 0.0
        %299 = vmatprep.subr.mxu0 0.0
        %300 = vmatpush1.xpose.msra.mxu0 0.0
        %301 = vmatprep.subr.mxu0 0.0
        %302 = vmatpush1.xpose.msra.mxu0 0.0
        %303 = vmatprep.subr.mxu0 0.0
        %304 = vmatpush1.xpose.msra.mxu0 0.0
        %305 = vmatprep.subr.mxu0 0.0
        %306 = vmatpush1.xpose.msra.mxu0 0.0
        %307 = vmatprep.subr.mxu0 0.0
        %308 = vmatpush1.xpose.msra.mxu0 0.0
        %309 = vmatprep.subr.mxu0 0.0
        %310 = vmatpush1.xpose.msra.mxu0 0.0
        %311 = vmatprep.subr.mxu0 0.0
        %312 = vmatpush1.xpose.msra.mxu0 0.0
        %313 = vmatprep.subr.mxu0 0.0
        %314 = vmatpush1.xpose.msra.mxu0 0.0
        %315 = vmatprep.subr.mxu0 0.0
        %316 = vmatpush1.xpose.msra.mxu0 0.0
        %317 = vmatprep.subr.mxu0 0.0
        %318 = vmatpush1.xpose.msra.mxu0 0.0
        %319 = vmatprep.subr.mxu0 0.0
        %320 = vmatpush1.xpose.msra.mxu0 0.0
        %321 = vmatprep.subr.mxu0 0.0
        %322 = vmatpush1.xpose.msra.mxu0 0.0
        %323 = vmatprep.subr.mxu0 0.0
        %324 = vmatpush1.xpose.msra.mxu0 0.0
        %325 = vmatprep.subr.mxu0 0.0
        %326 = vmatpush1.xpose.msra.mxu0 0.0
        %327 = vmatprep.subr.mxu0 0.0
        %328 = vmatpush1.xpose.msra.mxu0 0.0
        %329 = vmatprep.subr.mxu0 0.0
        %330 = vmatpush1.xpose.msra.mxu0 0.0
        %331 = vmatprep.subr.mxu0 0.0
        %332 = vmatpush1.xpose.msra.mxu0 0.0
        %333 = vmatprep.subr.mxu0 0.0
        %334 = vmatpush1.xpose.msra.mxu0 0.0
        %335 = vmatprep.subr.mxu0 0.0
        %336 = vmatpush1.xpose.msra.mxu0 0.0
        %337 = vmatprep.subr.mxu0 0.0
        %338 = vmatpush1.xpose.msra.mxu0 0.0
        %339 = vmatprep.subr.mxu0 0.0
        %340 = vmatpush1.xpose.msra.mxu0 0.0
        %341 = vmatprep.subr.mxu0 0.0
        %342 = vmatpush1.xpose.msra.mxu0 0.0
        %343 = vmatprep.subr.mxu0 0.0
        %344 = vmatpush1.xpose.msra.mxu0 0.0
        %345 = vmatprep.subr.mxu0 0.0
        %346 = vmatpush1.xpose.msra.mxu0 0.0
        %347 = vmatprep.subr.mxu0 0.0
        %348 = vmatpush1.xpose.msra.mxu0 0.0
        %349 = vmatprep.subr.mxu0 0.0
        %350 = vmatpush1.xpose.msra.mxu0 0.0
        %351 = vmatprep.subr.mxu0 0.0
        %352 = vmatpush1.xpose.msra.mxu0 0.0
        %353 = vmatprep.mubr.f32.mxu0 %v259
        %354 = vmatmul.mubr.f32.gmra.mrb[0].mxu0 %v258
        %v355 = vpop.f32.mrb[0].mxu0
        %v356 = vadd.f32 1e-12, %v355
        %v357 = vpop.f32.mrb[0].mxu0
        %358 = vmatprep.mubr.f32.mxu0 %v262
        %359 = vmatmul.mubr.f32.gmra.mrb[0].mxu0 %v261
        %v360 = vpop.f32.mrb[0].mxu0
        %v361 = vadd.f32 1e-12, %v360
        %v362 = vpop.f32.mrb[0].mxu0
        %363 = vmatprep.mubr.f32.mxu0 %v265
        %364 = vmatmul.mubr.f32.gmra.mrb[0].mxu0 %v264
        %v365 = vpop.f32.mrb[0].mxu0
        %v366 = vadd.f32 1e-12, %v365
        %v367 = vpop.f32.mrb[0].mxu0
        %368 = vmatprep.mubr.f32.mxu0 %v268
        %369 = vmatmul.mubr.f32.gmra.mrb[0].mxu0 %v267
        %v370 = vpop.f32.mrb[0].mxu0
        %v371 = vadd.f32 1e-12, %v370
        %v372 = vpop.f32.mrb[0].mxu0
        %373 = vdwg.mxu0
        %374 = vmatprep.subr.mxu0 0.0
        %375 = vmatpush1.xpose.msra.mxu0 %v284
        %376 = vmatprep.subr.mxu0 0.0
        %377 = vmatpush1.xpose.msra.mxu0 %v287
        %378 = vmatprep.subr.mxu0 0.0
        %379 = vmatpush1.xpose.msra.mxu0 0.0
        %380 = vmatprep.subr.mxu0 0.0
        %381 = vmatpush1.xpose.msra.mxu0 0.0
        %382 = vmatprep.subr.mxu0 0.0
        %383 = vmatpush1.xpose.msra.mxu0 0.0
        %384 = vmatprep.subr.mxu0 0.0
        %385 = vmatpush1.xpose.msra.mxu0 0.0
        %386 = vmatprep.subr.mxu0 0.0
        %387 = vmatpush1.xpose.msra.mxu0 0.0
        %388 = vmatprep.subr.mxu0 0.0
        %389 = vmatpush1.xpose.msra.mxu0 0.0
        %390 = vmatprep.subr.mxu0 0.0
        %391 = vmatpush1.xpose.msra.mxu0 0.0
        %392 = vmatprep.subr.mxu0 0.0
        %393 = vmatpush1.xpose.msra.mxu0 0.0
        %394 = vmatprep.subr.mxu0 0.0
        %395 = vmatpush1.xpose.msra.mxu0 0.0
        %396 = vmatprep.subr.mxu0 0.0
        %397 = vmatpush1.xpose.msra.mxu0 0.0
        %398 = vmatprep.subr.mxu0 0.0
        %399 = vmatpush1.xpose.msra.mxu0 0.0
        %400 = vmatprep.subr.mxu0 0.0
        %401 = vmatpush1.xpose.msra.mxu0 0.0
        %402 = vmatprep.subr.mxu0 0.0
        %403 = vmatpush1.xpose.msra.mxu0 0.0
        %404 = vmatprep.subr.mxu0 0.0
        %405 = vmatpush1.xpose.msra.mxu0 0.0
        %406 = vmatprep.subr.mxu0 0.0
        %407 = vmatpush1.xpose.msra.mxu0 0.0
        %408 = vmatprep.subr.mxu0 0.0
        %409 = vmatpush1.xpose.msra.mxu0 0.0
        %410 = vmatprep.subr.mxu0 0.0
        %411 = vmatpush1.xpose.msra.mxu0 0.0
        %412 = vmatprep.subr.mxu0 0.0
        %413 = vmatpush1.xpose.msra.mxu0 0.0
        %414 = vmatprep.subr.mxu0 0.0
        %415 = vmatpush1.xpose.msra.mxu0 0.0
        %416 = vmatprep.subr.mxu0 0.0
        %417 = vmatpush1.xpose.msra.mxu0 0.0
        %418 = vmatprep.subr.mxu0 0.0
        %419 = vmatpush1.xpose.msra.mxu0 0.0
        %420 = vmatprep.subr.mxu0 0.0
        %421 = vmatpush1.xpose.msra.mxu0 0.0
        %422 = vmatprep.subr.mxu0 0.0
        %423 = vmatpush1.xpose.msra.mxu0 0.0
        %424 = vmatprep.subr.mxu0 0.0
        %425 = vmatpush1.xpose.msra.mxu0 0.0
        %426 = vmatprep.subr.mxu0 0.0
        %427 = vmatpush1.xpose.msra.mxu0 0.0
        %428 = vmatprep.subr.mxu0 0.0
        %429 = vmatpush1.xpose.msra.mxu0 0.0
        %430 = vmatprep.subr.mxu0 0.0
        %431 = vmatpush1.xpose.msra.mxu0 0.0
        %432 = vmatprep.subr.mxu0 0.0
        %433 = vmatpush1.xpose.msra.mxu0 0.0
        %434 = vmatprep.subr.mxu0 0.0
        %435 = vmatpush1.xpose.msra.mxu0 0.0
        %436 = vmatprep.subr.mxu0 0.0
        %437 = vmatpush1.xpose.msra.mxu0 0.0
        %438 = vmatprep.mubr.f32.mxu0 0.0
        %439 = vmatmul.mubr.f32.gmra.mrb[0].mxu0 %v272
        %v440 = vpop.f32.mrb[0].mxu0
        %v441 = vadd.f32 %v356, %v440
        %v442 = vpop.f32.mrb[0].mxu0
        %443 = vmatprep.mubr.f32.mxu0 0.0
        %444 = vmatmul.mubr.f32.gmra.mrb[0].mxu0 %v275
        %v445 = vpop.f32.mrb[0].mxu0
        %v446 = vadd.f32 %v361, %v445
        %v447 = vpop.f32.mrb[0].mxu0
        %448 = vmatprep.mubr.f32.mxu0 0.0
        %449 = vmatmul.mubr.f32.gmra.mrb[0].mxu0 %v278
        %v450 = vpop.f32.mrb[0].mxu0
        %v451 = vadd.f32 %v366, %v450
        %v452 = vpop.f32.mrb[0].mxu0
        %453 = vmatprep.mubr.f32.mxu0 0.0
        %454 = vmatmul.mubr.f32.gmra.mrb[0].mxu0 %v281
        %v455 = vpop.f32.mrb[0].mxu0
        %v456 = vadd.f32 %v371, %v455
        %v457 = vpop.f32.mrb[0].mxu0
        %458 = vdwg.mxu0
        %v459 = vlog2.pop %v441
        %v460 = vmul.f32 %v459, 0.6931472
        %v461 = vlog2.pop %v446
        %v462 = vmul.f32 %v461, 0.6931472
        %v463 = vlog2.pop %v451
        %v464 = vmul.f32 %v463, 0.6931472
        %v465 = vlog2.pop %v456
        %v466 = vmul.f32 %v465, 0.6931472
        %v467 = vld [vmem:[%s2] sm:$0x1]
        %472 = vrot.lane.b32.xlu0 %v460, 127
        %v473 = vpop.permute.xlu0 %472
        %474 = vrot.lane.b32.xlu0 %v462, 127
        %v475 = vpop.permute.xlu0 %474
        %476 = vrot.lane.b32.xlu0 %v464, 127
        %v477 = vpop.permute.xlu0 %476
        %478 = vrot.lane.b32.xlu0 %v466, 127
        %v479 = vpop.permute.xlu0 %478
        %484 = vrot.lane.b32.xlu0 %v460, 15
        %v485 = vpop.permute.xlu0 %484
        %486 = vrot.lane.b32.xlu0 %v462, 15
        %v487 = vpop.permute.xlu0 %486
        %488 = vrot.lane.b32.xlu0 %v464, 15
        %v489 = vpop.permute.xlu0 %488
        %490 = vrot.lane.b32.xlu0 %v466, 15
        %v491 = vpop.permute.xlu0 %490
        %vm496 = vcmask 121856
        %v497 = vsel %vm496, %v473, %v485
        %v498 = vsel %vm496, %v475, %v487
        %v499 = vsel %vm496, %v477, %v489
        %v500 = vsel %vm496, %v479, %v491
        %501 = vrot.lane.b32.xlu0 %v460, 126
        %v502 = vpop.permute.xlu0 %501
        %503 = vrot.lane.b32.xlu0 %v462, 126
        %v504 = vpop.permute.xlu0 %503
        %505 = vrot.lane.b32.xlu0 %v464, 126
        %v506 = vpop.permute.xlu0 %505
        %507 = vrot.lane.b32.xlu0 %v466, 126
        %v508 = vpop.permute.xlu0 %507
        %513 = vrot.lane.b32.xlu0 %v460, 14
        %v514 = vpop.permute.xlu0 %513
        %515 = vrot.lane.b32.xlu0 %v462, 14
        %v516 = vpop.permute.xlu0 %515
        %517 = vrot.lane.b32.xlu0 %v464, 14
        %v518 = vpop.permute.xlu0 %517
        %519 = vrot.lane.b32.xlu0 %v466, 14
        %v520 = vpop.permute.xlu0 %519
        %vm525 = vcmask 113664
        %v526 = vsel %vm525, %v502, %v514
        %v527 = vsel %vm525, %v504, %v516
        %v528 = vsel %vm525, %v506, %v518
        %v529 = vsel %vm525, %v508, %v520
        %530 = vrot.lane.b32.xlu0 %v460, 113
        %v531 = vpop.permute.xlu0 %530
        %532 = vrot.lane.b32.xlu0 %v462, 113
        %v533 = vpop.permute.xlu0 %532
        %534 = vrot.lane.b32.xlu0 %v464, 113
        %v535 = vpop.permute.xlu0 %534
        %536 = vrot.lane.b32.xlu0 %v466, 113
        %v537 = vpop.permute.xlu0 %536
        %542 = vrot.lane.b32.xlu0 %v460, 1
        %v543 = vpop.permute.xlu0 %542
        %544 = vrot.lane.b32.xlu0 %v462, 1
        %v545 = vpop.permute.xlu0 %544
        %546 = vrot.lane.b32.xlu0 %v464, 1
        %v547 = vpop.permute.xlu0 %546
        %548 = vrot.lane.b32.xlu0 %v466, 1
        %v549 = vpop.permute.xlu0 %548
        %vm554 = vcmask 7168
        %v555 = vsel %vm554, %v531, %v543
        %v556 = vsel %vm554, %v533, %v545
        %v557 = vsel %vm554, %v535, %v547
        %v558 = vsel %vm554, %v537, %v549
        %559 = vrot.lane.b32.xlu0 %v460, 114
        %v560 = vpop.permute.xlu0 %559
        %561 = vrot.lane.b32.xlu0 %v462, 114
        %v562 = vpop.permute.xlu0 %561
        %563 = vrot.lane.b32.xlu0 %v464, 114
        %v564 = vpop.permute.xlu0 %563
        %565 = vrot.lane.b32.xlu0 %v466, 114
        %v566 = vpop.permute.xlu0 %565
        %571 = vrot.lane.b32.xlu0 %v460, 2
        %v572 = vpop.permute.xlu0 %571
        %573 = vrot.lane.b32.xlu0 %v462, 2
        %v574 = vpop.permute.xlu0 %573
        %575 = vrot.lane.b32.xlu0 %v464, 2
        %v576 = vpop.permute.xlu0 %575
        %577 = vrot.lane.b32.xlu0 %v466, 2
        %v578 = vpop.permute.xlu0 %577
        %v583 = vsel %vm270, %v560, %v572
        %v584 = vsel %vm270, %v562, %v574
        %v585 = vsel %vm270, %v564, %v576
        %v586 = vsel %vm270, %v566, %v578
        %vm587 = vcmp.eq.s32.totalorder %v467, 15
        %v588 = vsel %vm587, 1, 0
        %v589 = vlaneseq
        %v590 = vshrl.u32 %v589, 7
        %v591 = vsub.s32 0, %v590
        %v592 = vrot.slane %v588, %v591
        %vm593 = vcmp.eq.s32.totalorder %v592, 1
        %v594 = vsel %vm593, %v460, %v497
        %v595 = vsel %vm593, %v462, %v498
        %v596 = vsel %vm593, %v464, %v499
        %v597 = vsel %vm593, %v466, %v500
        %vm598 = vcmp.ge.s32.totalorder %v467, 14
        %v599 = vsel %vm598, 1, 0
        %v600 = vlaneseq
        %v601 = vshrl.u32 %v600, 7
        %v602 = vsub.s32 0, %v601
        %v603 = vrot.slane %v599, %v602
        %vm604 = vcmp.eq.s32.totalorder %v603, 1
        %v605 = vsel %vm604, %v497, %v526
        %v606 = vsel %vm604, %v498, %v527
        %v607 = vsel %vm604, %v499, %v528
        %v608 = vsel %vm604, %v500, %v529
        %v609 = vsel %vm593, %v460, %v605
        %v610 = vsel %vm593, %v462, %v606
        %v611 = vsel %vm593, %v464, %v607
        %v612 = vsel %vm593, %v466, %v608
        %vm613 = vcmp.eq.s32.totalorder %v467, 0
        %v614 = vsel %vm613, 1, 0
        %v615 = vlaneseq
        %v616 = vshrl.u32 %v615, 7
        %v617 = vsub.s32 0, %v616
        %v618 = vrot.slane %v614, %v617
        %vm619 = vcmp.eq.s32.totalorder %v618, 1
        %v620 = vsel %vm619, %v460, %v555
        %v621 = vsel %vm619, %v462, %v556
        %v622 = vsel %vm619, %v464, %v557
        %v623 = vsel %vm619, %v466, %v558
        %vm624 = vcmp.le.s32.totalorder %v467, 1
        %v625 = vsel %vm624, 1, 0
        %v626 = vlaneseq
        %v627 = vshrl.u32 %v626, 7
        %v628 = vsub.s32 0, %v627
        %v629 = vrot.slane %v625, %v628
        %vm630 = vcmp.eq.s32.totalorder %v629, 1
        %v631 = vsel %vm630, %v555, %v583
        %v632 = vsel %vm630, %v556, %v584
        %v633 = vsel %vm630, %v557, %v585
        %v634 = vsel %vm630, %v558, %v586
        %v635 = vsel %vm619, %v460, %v631
        %v636 = vsel %vm619, %v462, %v632
        %v637 = vsel %vm619, %v464, %v633
        %v638 = vsel %vm619, %v466, %v634
        %v639 = vsub.f32 %v594, %v620
        %v640 = vsub.f32 %v595, %v621
        %v641 = vsub.f32 %v596, %v622
        %v642 = vsub.f32 %v597, %v623
        %v643 = vsub.f32 %v609, %v635
        %v644 = vsub.f32 %v610, %v636
        %v645 = vsub.f32 %v611, %v637
        %v646 = vsub.f32 %v612, %v638
        %v647 = vmul.f32 %v643, 2.0
        %v648 = vmul.f32 %v644, 2.0
        %v649 = vmul.f32 %v645, 2.0
        %v650 = vmul.f32 %v646, 2.0
        %v651 = vadd.f32 %v639, %v647
        %v652 = vadd.f32 %v640, %v648
        %v653 = vadd.f32 %v641, %v649
        %v654 = vadd.f32 %v642, %v650
        %v655 = vmul.f32 %v651, 0.1
        %v656 = vmul.f32 %v652, 0.1
        %v657 = vmul.f32 %v653, 0.1
        %v658 = vmul.f32 %v654, 0.1
        %663 = vrot.lane.b32.xlu0 %v655, 127
        %v664 = vpop.permute.xlu0 %663
        %665 = vrot.lane.b32.xlu0 %v656, 127
        %v666 = vpop.permute.xlu0 %665
        %667 = vrot.lane.b32.xlu0 %v657, 127
        %v668 = vpop.permute.xlu0 %667
        %669 = vrot.lane.b32.xlu0 %v658, 127
        %v670 = vpop.permute.xlu0 %669
        %675 = vrot.lane.b32.xlu0 %v655, 15
        %v676 = vpop.permute.xlu0 %675
        %677 = vrot.lane.b32.xlu0 %v656, 15
        %v678 = vpop.permute.xlu0 %677
        %679 = vrot.lane.b32.xlu0 %v657, 15
        %v680 = vpop.permute.xlu0 %679
        %681 = vrot.lane.b32.xlu0 %v658, 15
        %v682 = vpop.permute.xlu0 %681
        %v687 = vsel %vm496, %v664, %v676
        %v688 = vsel %vm496, %v666, %v678
        %v689 = vsel %vm496, %v668, %v680
        %v690 = vsel %vm496, %v670, %v682
        %691 = vrot.lane.b32.xlu0 %v655, 126
        %v692 = vpop.permute.xlu0 %691
        %693 = vrot.lane.b32.xlu0 %v656, 126
        %v694 = vpop.permute.xlu0 %693
        %695 = vrot.lane.b32.xlu0 %v657, 126
        %v696 = vpop.permute.xlu0 %695
        %697 = vrot.lane.b32.xlu0 %v658, 126
        %v698 = vpop.permute.xlu0 %697
        %703 = vrot.lane.b32.xlu0 %v655, 14
        %v704 = vpop.permute.xlu0 %703
        %705 = vrot.lane.b32.xlu0 %v656, 14
        %v706 = vpop.permute.xlu0 %705
        %707 = vrot.lane.b32.xlu0 %v657, 14
        %v708 = vpop.permute.xlu0 %707
        %709 = vrot.lane.b32.xlu0 %v658, 14
        %v710 = vpop.permute.xlu0 %709
        %v715 = vsel %vm525, %v692, %v704
        %v716 = vsel %vm525, %v694, %v706
        %v717 = vsel %vm525, %v696, %v708
        %v718 = vsel %vm525, %v698, %v710
        %719 = vrot.lane.b32.xlu0 %v655, 113
        %v720 = vpop.permute.xlu0 %719
        %721 = vrot.lane.b32.xlu0 %v656, 113
        %v722 = vpop.permute.xlu0 %721
        %723 = vrot.lane.b32.xlu0 %v657, 113
        %v724 = vpop.permute.xlu0 %723
        %725 = vrot.lane.b32.xlu0 %v658, 113
        %v726 = vpop.permute.xlu0 %725
        %731 = vrot.lane.b32.xlu0 %v655, 1
        %v732 = vpop.permute.xlu0 %731
        %733 = vrot.lane.b32.xlu0 %v656, 1
        %v734 = vpop.permute.xlu0 %733
        %735 = vrot.lane.b32.xlu0 %v657, 1
        %v736 = vpop.permute.xlu0 %735
        %737 = vrot.lane.b32.xlu0 %v658, 1
        %v738 = vpop.permute.xlu0 %737
        %v743 = vsel %vm554, %v720, %v732
        %v744 = vsel %vm554, %v722, %v734
        %v745 = vsel %vm554, %v724, %v736
        %v746 = vsel %vm554, %v726, %v738
        %747 = vrot.lane.b32.xlu0 %v655, 114
        %v748 = vpop.permute.xlu0 %747
        %749 = vrot.lane.b32.xlu0 %v656, 114
        %v750 = vpop.permute.xlu0 %749
        %751 = vrot.lane.b32.xlu0 %v657, 114
        %v752 = vpop.permute.xlu0 %751
        %753 = vrot.lane.b32.xlu0 %v658, 114
        %v754 = vpop.permute.xlu0 %753
        %759 = vrot.lane.b32.xlu0 %v655, 2
        %v760 = vpop.permute.xlu0 %759
        %761 = vrot.lane.b32.xlu0 %v656, 2
        %v762 = vpop.permute.xlu0 %761
        %763 = vrot.lane.b32.xlu0 %v657, 2
        %v764 = vpop.permute.xlu0 %763
        %765 = vrot.lane.b32.xlu0 %v658, 2
        %v766 = vpop.permute.xlu0 %765
        %v771 = vsel %vm270, %v748, %v760
        %v772 = vsel %vm270, %v750, %v762
        %v773 = vsel %vm270, %v752, %v764
        %v774 = vsel %vm270, %v754, %v766
        %v775 = vsel %vm593, %v655, %v687
        %v776 = vsel %vm593, %v656, %v688
        %v777 = vsel %vm593, %v657, %v689
        %v778 = vsel %vm593, %v658, %v690
        %v779 = vsel %vm604, %v687, %v715
        %v780 = vsel %vm604, %v688, %v716
        %v781 = vsel %vm604, %v689, %v717
        %v782 = vsel %vm604, %v690, %v718
        %v783 = vsel %vm593, %v655, %v779
        %v784 = vsel %vm593, %v656, %v780
        %v785 = vsel %vm593, %v657, %v781
        %v786 = vsel %vm593, %v658, %v782
        %v787 = vsel %vm619, %v655, %v743
        %v788 = vsel %vm619, %v656, %v744
        %v789 = vsel %vm619, %v657, %v745
        %v790 = vsel %vm619, %v658, %v746
        %v791 = vsel %vm630, %v743, %v771
        %v792 = vsel %vm630, %v744, %v772
        %v793 = vsel %vm630, %v745, %v773
        %v794 = vsel %vm630, %v746, %v774
        %v795 = vsel %vm619, %v655, %v791
        %v796 = vsel %vm619, %v656, %v792
        %v797 = vsel %vm619, %v657, %v793
        %v798 = vsel %vm619, %v658, %v794
        %v799 = vsub.f32 %v775, %v787
        %v800 = vsub.f32 %v776, %v788
        %v801 = vsub.f32 %v777, %v789
        %v802 = vsub.f32 %v778, %v790
        %v803 = vsub.f32 %v783, %v795
        %v804 = vsub.f32 %v784, %v796
        %v805 = vsub.f32 %v785, %v797
        %v806 = vsub.f32 %v786, %v798
        %v807 = vmul.f32 %v803, 2.0
        %v808 = vmul.f32 %v804, 2.0
        %v809 = vmul.f32 %v805, 2.0
        %v810 = vmul.f32 %v806, 2.0
        %v811 = vadd.f32 %v799, %v807
        %v812 = vadd.f32 %v800, %v808
        %v813 = vadd.f32 %v801, %v809
        %v814 = vadd.f32 %v802, %v810
        %v815 = vmul.f32 %v811, 0.1
        %v816 = vmul.f32 %v812, 0.1
        %v817 = vmul.f32 %v813, 0.1
        %v818 = vmul.f32 %v814, 0.1
        %vm819 = vcmask 130048
        %820 = vst.msk [vmem:[%s240] sm:$0xff] %vm819, %v460
        %821 = vst.msk [vmem:[%s240 + $0x8] sm:$0xff] %vm819, %v462
        %822 = vst.msk [vmem:[%s240 + $0x10] sm:$0xff] %vm819, %v464
        %823 = vst.msk [vmem:[%s240 + $0x18] sm:$0xff] %vm819, %v466
        %v824 = vsel %vm819, %v460, 0.0
        %825 = vadd.xlane.f32.xlu0 %v824
        %v826 = vpop.xlane.xlu0 %825
        %v827 = vsel %vm819, %v462, 0.0
        %828 = vadd.xlane.f32.xlu0 %v827
        %v829 = vpop.xlane.xlu0 %828
        %v830 = vsel %vm819, %v464, 0.0
        %831 = vadd.xlane.f32.xlu0 %v830
        %v832 = vpop.xlane.xlu0 %831
        %v833 = vsel %vm819, %v466, 0.0
        %834 = vadd.xlane.f32.xlu0 %v833
        %v835 = vpop.xlane.xlu0 %834
        %v836 = vmul.f32 %v460, %v460
        %v837 = vmul.f32 %v462, %v462
        %v838 = vmul.f32 %v464, %v464
        %v839 = vmul.f32 %v466, %v466
        %v840 = vsel %vm819, %v836, 0.0
        %841 = vadd.xlane.f32.xlu0 %v840
        %v842 = vpop.xlane.xlu0 %841
        %v843 = vsel %vm819, %v837, 0.0
        %844 = vadd.xlane.f32.xlu0 %v843
        %v845 = vpop.xlane.xlu0 %844
        %v846 = vsel %vm819, %v838, 0.0
        %847 = vadd.xlane.f32.xlu0 %v846
        %v848 = vpop.xlane.xlu0 %847
        %v849 = vsel %vm819, %v839, 0.0
        %850 = vadd.xlane.f32.xlu0 %v849
        %v851 = vpop.xlane.xlu0 %850
        %v852 = vsel %vm554, %v826, %v842
        %v853 = vsel %vm554, %v829, %v845
        %v854 = vsel %vm554, %v832, %v848
        %v855 = vsel %vm554, %v835, %v851
        %856 = vst.msk [vmem:[%s245] sm:$0xff] %vm270, %v852
        %857 = vst.msk [vmem:[%s245 + $0x8] sm:$0xff] %vm270, %v853
        %858 = vst.msk [vmem:[%s245 + $0x10] sm:$0xff] %vm270, %v854
        %859 = vst.msk [vmem:[%s245 + $0x18] sm:$0xff] %vm270, %v855
        %s860 = scalar_lea.vmem %s240, 32
        %861 = vst.msk [vmem:[%s860] sm:$0xff] %vm819, %v655
        %862 = vst.msk [vmem:[%s860 + $0x8] sm:$0xff] %vm819, %v656
        %863 = vst.msk [vmem:[%s860 + $0x10] sm:$0xff] %vm819, %v657
        %864 = vst.msk [vmem:[%s860 + $0x18] sm:$0xff] %vm819, %v658
        %v865 = vsel %vm819, %v655, 0.0
        %866 = vadd.xlane.f32.xlu0 %v865
        %v867 = vpop.xlane.xlu0 %866
        %v868 = vsel %vm819, %v656, 0.0
        %869 = vadd.xlane.f32.xlu0 %v868
        %v870 = vpop.xlane.xlu0 %869
        %v871 = vsel %vm819, %v657, 0.0
        %872 = vadd.xlane.f32.xlu0 %v871
        %v873 = vpop.xlane.xlu0 %872
        %v874 = vsel %vm819, %v658, 0.0
        %875 = vadd.xlane.f32.xlu0 %v874
        %v876 = vpop.xlane.xlu0 %875
        %v877 = vmul.f32 %v655, %v655
        %v878 = vmul.f32 %v656, %v656
        %v879 = vmul.f32 %v657, %v657
        %v880 = vmul.f32 %v658, %v658
        %v881 = vsel %vm819, %v877, 0.0
        %882 = vadd.xlane.f32.xlu0 %v881
        %v883 = vpop.xlane.xlu0 %882
        %v884 = vsel %vm819, %v878, 0.0
        %885 = vadd.xlane.f32.xlu0 %v884
        %v886 = vpop.xlane.xlu0 %885
        %v887 = vsel %vm819, %v879, 0.0
        %888 = vadd.xlane.f32.xlu0 %v887
        %v889 = vpop.xlane.xlu0 %888
        %v890 = vsel %vm819, %v880, 0.0
        %891 = vadd.xlane.f32.xlu0 %v890
        %v892 = vpop.xlane.xlu0 %891
        %v893 = vsel %vm554, %v867, %v883
        %v894 = vsel %vm554, %v870, %v886
        %v895 = vsel %vm554, %v873, %v889
        %v896 = vsel %vm554, %v876, %v892
        %s897 = scalar_lea.vmem %s245, 32
        %898 = vst.msk [vmem:[%s897] sm:$0xff] %vm270, %v893
        %899 = vst.msk [vmem:[%s897 + $0x8] sm:$0xff] %vm270, %v894
        %900 = vst.msk [vmem:[%s897 + $0x10] sm:$0xff] %vm270, %v895
        %901 = vst.msk [vmem:[%s897 + $0x18] sm:$0xff] %vm270, %v896
        %s902 = scalar_lea.vmem %s240, 64
        %903 = vst.msk [vmem:[%s902] sm:$0xff] %vm819, %v815
        %904 = vst.msk [vmem:[%s902 + $0x8] sm:$0xff] %vm819, %v816
        %905 = vst.msk [vmem:[%s902 + $0x10] sm:$0xff] %vm819, %v817
        %906 = vst.msk [vmem:[%s902 + $0x18] sm:$0xff] %vm819, %v818
        %v907 = vsel %vm819, %v815, 0.0
        %908 = vadd.xlane.f32.xlu0 %v907
        %v909 = vpop.xlane.xlu0 %908
        %v910 = vsel %vm819, %v816, 0.0
        %911 = vadd.xlane.f32.xlu0 %v910
        %v912 = vpop.xlane.xlu0 %911
        %v913 = vsel %vm819, %v817, 0.0
        %914 = vadd.xlane.f32.xlu0 %v913
        %v915 = vpop.xlane.xlu0 %914
        %v916 = vsel %vm819, %v818, 0.0
        %917 = vadd.xlane.f32.xlu0 %v916
        %v918 = vpop.xlane.xlu0 %917
        %v919 = vmul.f32 %v815, %v815
        %v920 = vmul.f32 %v816, %v816
        %v921 = vmul.f32 %v817, %v817
        %v922 = vmul.f32 %v818, %v818
        %v923 = vsel %vm819, %v919, 0.0
        %924 = vadd.xlane.f32.xlu0 %v923
        %v925 = vpop.xlane.xlu0 %924
        %v926 = vsel %vm819, %v920, 0.0
        %927 = vadd.xlane.f32.xlu0 %v926
        %v928 = vpop.xlane.xlu0 %927
        %v929 = vsel %vm819, %v921, 0.0
        %930 = vadd.xlane.f32.xlu0 %v929
        %v931 = vpop.xlane.xlu0 %930
        %v932 = vsel %vm819, %v922, 0.0
        %933 = vadd.xlane.f32.xlu0 %v932
        %v934 = vpop.xlane.xlu0 %933
        %v935 = vsel %vm554, %v909, %v925
        %v936 = vsel %vm554, %v912, %v928
        %v937 = vsel %vm554, %v915, %v931
        %v938 = vsel %vm554, %v918, %v934
        %s939 = scalar_lea.vmem %s245, 64
        %940 = vst.msk [vmem:[%s939] sm:$0xff] %vm270, %v935
        %941 = vst.msk [vmem:[%s939 + $0x8] sm:$0xff] %vm270, %v936
        %942 = vst.msk [vmem:[%s939 + $0x10] sm:$0xff] %vm270, %v937
        %943 = vst.msk [vmem:[%s939 + $0x18] sm:$0xff] %vm270, %v938
        %p944 = scmp.lt.s32.totalorder %s20, 1
        %s945 = scalar_select %p944, %s20, 1
        %s946 = smul.addr %s945, 12
        %s947 = smul.addr %s946, 8
        %s948 = scalar_lea.vmem %s3, %s947
        %p949 = scmp.lt.s32.totalorder %s20, 1
        %s950 = scalar_select %p949, %s20, 1
        %s951 = smul.addr %s950, 12
        %s952 = smul.addr %s951, 8
        %s953 = scalar_lea.vmem %s4, %s952
        // Predicated region
        $region41: #{tpu_custom_call.1} parent=31 // pred_check
          %p954 = pneg %p106
        $region42: #{tpu_custom_call.1} parent=31 // pred_check_branch
          %956 = sbr.rel (%p954) target = $region44
        $region43: #{tpu_custom_call.1} parent=31 // pred_region
          _
        $region44: #{tpu_custom_call.1} parent=31 // pred_fallthru
          _
        // Predicated region
        $region45: #{tpu_custom_call.1} parent=31 // pred_check
          %p957 = pneg %p132
        $region46: #{tpu_custom_call.1} parent=31 // pred_check_branch
          %959 = sbr.rel (%p957) target = $region48
        $region47: #{tpu_custom_call.1} parent=31 // pred_region
          _
        $region48: #{tpu_custom_call.1} parent=31 // pred_fallthru
          _
      $region32: #{tpu_custom_call.1} parent=5 // pred_fallthru
        _
      %p960 = scmp.le.s32.totalorder 2, %s15
      // Predicated region
      $region49: #{tpu_custom_call.1} parent=5 // pred_check
        %p961 = pneg %p960
      $region50: #{tpu_custom_call.1} parent=5 // pred_check_branch
        %963 = sbr.rel (%p961) target = $region52
      $region51: #{tpu_custom_call.1} parent=5 // pred_region
        %s964 = ssub.s32 %s15, 2
        // Predicated region
        $region53: #{tpu_custom_call.1} parent=51 // pred_check
          %p965 = pneg %p112
        $region54: #{tpu_custom_call.1} parent=51 // pred_check_branch
          %967 = sbr.rel (%p965) target = $region56
        $region55: #{tpu_custom_call.1} parent=51 // pred_region
          %p968 = scmp.lt.s32.totalorder %s21, 1
          %s969 = scalar_select %p968, %s21, 1
          %s970 = smul.addr %s969, 12
          %s971 = smul.addr %s970, 8
          %s972 = scalar_lea.vmem %s3, %s971
        $region56: #{tpu_custom_call.1} parent=51 // pred_fallthru
          _
        // Predicated region
        $region57: #{tpu_custom_call.1} parent=51 // pred_check
          %p973 = pneg %p138
        $region58: #{tpu_custom_call.1} parent=51 // pred_check_branch
          %975 = sbr.rel (%p973) target = $region60
        $region59: #{tpu_custom_call.1} parent=51 // pred_region
          %p976 = scmp.lt.s32.totalorder %s21, 1
          %s977 = scalar_select %p976, %s21, 1
          %s978 = smul.addr %s977, 12
          %s979 = smul.addr %s978, 8
          %s980 = scalar_lea.vmem %s4, %s979
        $region60: #{tpu_custom_call.1} parent=51 // pred_fallthru
          _
      $region52: #{tpu_custom_call.1} parent=5 // pred_fallthru
        _
    $region6: #{tpu_custom_call.1} parent=1 // loop_footer
      %s19 = sadd.s32 1, %s15
    $region7: #{tpu_custom_call.1} parent=1 // loop_footer_branch
      %14 = sbr.rel target = $region3
    $region8: #{tpu_custom_call.1} parent=1 // loop_exit
      _
    %981 = vsyncpa [#allocation3], 1
    %s982 = scalar_lea.sflag [#allocation3], 1
    %983 = vsyncpa %s982, 1
    %984 = vsyncpa [#allocation5], 1

</llo_original>
